<compile_context>
chip_gen: v5e
topology: v5e:2x2
jax: 0.10.0
libtpu: 0.0.40
codegen_flags: <defaults>
</compile_context>

<pallas_src>
import functools

import jax
import jax.numpy as jnp
from jax import lax
from jax.experimental import pallas as pl
from jax.experimental.pallas import tpu as pltpu


def pooler_kernel(x_ref, w_ref, b_ref, o_ref, *, compute_dtype):
    # x_ref: [B, H_in]   CLS activations, native dtype (cast to MXU feed here)
    # w_ref: [TN, H_in]  weight tile, PyTorch [out, in] layout, native dtype
    # b_ref: [1, TN]     bias tile
    # o_ref: [B, TN]     output tile (output dtype)
    x = x_ref[...].astype(compute_dtype)              # in-kernel cast (VPU, free
    w = w_ref[...].astype(compute_dtype)              # vs. the weight DMA)
    y = lax.dot_general(
        x, w,
        dimension_numbers=(((1,), (1,)), ((), ())),   # contract H_in with H_in
        preferred_element_type=jnp.float32,           # f32 MXU accumulation
    )
    y = y + b_ref[...].astype(jnp.float32)            # bias add in f32
    o_ref[...] = jnp.tanh(y).astype(o_ref.dtype)      # tanh in f32, then cast


def _round_up(x: int, m: int) -> int:
    return (x + m - 1) // m * m


def _pick_tile_n(h_out: int, h_in: int, stream_bytes: int,
                 budget_bytes: int = 12 << 20) -> int:
    """Output-feature tile.  h_out is already a multiple of 128.

    Budget = double-buffered weight tile (2 * tn * h_in * stream_bytes), capped
    at ~12 MiB so the pipeline fits v5e's 16 MiB default scoped VMEM (and is
    far under v6e/v7x's 32 MiB default)."""
    def fits(tn):
        return 2 * tn * h_in * stream_bytes <= budget_bytes

    # Prefer an even 2-way grid (balanced megacore split on v7x, ~one extra
    # 0.35 us step elsewhere) when the half tile is lane-aligned and fits.
    if h_out % 256 == 0 and fits(h_out // 2):
        return h_out // 2
    # Otherwise a single full-weight step (grid = 1).
    if fits(h_out):
        return h_out
    # Fallback for very large H: biggest lane-aligned divisor under the cap.
    for tn in range(h_out - 128, 127, -128):
        if h_out % tn == 0 and fits(tn):
            return tn
    return 128


def bert_pooler(hidden_states, weight, bias, *, compute_dtype=jnp.bfloat16):
    """hidden_states: [B, S, H]; weight: [H_out, H_in] (PyTorch nn.Linear
    layout, NOT transposed); bias: [H_out].

    Returns tanh(hidden_states[:, 0] @ weight.T + bias) in hidden_states.dtype.
    For best performance store `weight` pre-converted to bf16 (one-time, at
    parameter-load time); the kernel streams whatever dtype it is given and
    casts in VMEM."""
    B, S, H = hidden_states.shape
    H_out, H_in = weight.shape
    assert H_in == H

    # Cheap strided CLS slice (B*H elements). No dtype cast here.
    cls = hidden_states[:, 0]                              # [B, H_in]

    # Lane-dense output: pad the output-feature dim to a multiple of 128 so
    # stores are unmasked vst (only triggers for non-standard hidden sizes).
    H_out_p = _round_up(H_out, 128)
    if H_out_p != H_out:
        weight = jnp.pad(weight, ((0, H_out_p - H_out), (0, 0)))
        bias = jnp.pad(bias, (0, H_out_p - H_out))
    b2d = bias.reshape(1, H_out_p)                         # [1, H_out_p]

    w_bytes = jnp.dtype(weight.dtype).itemsize
    tn = _pick_tile_n(H_out_p, H_in, w_bytes)
    grid = (H_out_p // tn,)

    out_dtype = hidden_states.dtype
    cost = pl.CostEstimate(
        flops=2 * B * H_in * H_out_p,
        transcendentals=B * H_out_p,                       # tanh
        bytes_accessed=(B * H_in * jnp.dtype(cls.dtype).itemsize
                        + H_out_p * H_in * w_bytes
                        + H_out_p * jnp.dtype(bias.dtype).itemsize
                        + B * H_out_p * jnp.dtype(out_dtype).itemsize),
    )

    out = pl.pallas_call(
        functools.partial(pooler_kernel, compute_dtype=compute_dtype),
        grid=grid,
        in_specs=[
            # CLS activations: tiny, same block every step (fetched once).
            pl.BlockSpec((B, H_in), lambda j: (0, 0)),
            # Weight: one [TN, H_in] tile per grid step, double-buffered by
            # the Pallas pipeline (grid is 1-2 steps at BERT sizes).
            pl.BlockSpec((tn, H_in), lambda j: (j, 0)),
            # Bias tile.
            pl.BlockSpec((1, tn), lambda j: (0, j)),
        ],
        out_specs=pl.BlockSpec((B, tn), lambda j: (0, j)),
        out_shape=jax.ShapeDtypeStruct((B, H_out_p), out_dtype),
        compiler_params=pltpu.CompilerParams(
            # Output-feature tiles are independent -> even split across v7x's
            # two TensorCores when grid == 2 (no effect on v5e/v6e).
            dimension_semantics=("parallel",),
        ),
        cost_estimate=cost,
    )(cls, weight, b2d)

    return out[:, :H_out] if H_out_p != H_out else out


if __name__ == "__main__":
    # Small shapes: batch=2, seq=8, hidden=32
    B, S, H = 2, 8, 32
    key = jax.random.PRNGKey(0)
    k_x, k_w, k_b = jax.random.split(key, 3)

    hidden_states = jax.random.normal(k_x, (B, S, H), dtype=jnp.float32)

    # Deterministic nn.Linear-style init: U(-1/sqrt(H), 1/sqrt(H))
    bound = 1.0 / (H ** 0.5)
    weight = jax.random.uniform(k_w, (H, H), jnp.float32, -bound, bound)  # [out, in]
    bias = jax.random.uniform(k_b, (H,), jnp.float32, -bound, bound)

    # One-time, parameter-load-time conversion of the weight to the MXU feed
    # dtype (this is NOT in the per-call hot path).
    weight_param = weight.astype(jnp.bfloat16)

    out = jax.block_until_ready(bert_pooler(hidden_states, weight_param, bias))

    # Reference check (pure JAX, f32 weights). The kernel feeds the MXU in
    # bf16 (f32 accumulation), so use a bf16-appropriate tolerance; outputs
    # are tanh-bounded in [-1, 1].
    ref = jnp.tanh(hidden_states[:, 0] @ weight.T + bias)
    assert out.shape == (B, H)
    assert out.dtype == hidden_states.dtype
    err = float(jnp.max(jnp.abs(out.astype(jnp.float32) - ref)))
    assert err < 3e-2, f"max abs error {err}"

    print("KERNEL_OK")
</pallas_src>

<mosaic_0001>
module attributes {stable_mosaic.version = 11 : i64} {
  func.func @pooler_kernel(%arg0: i32, %arg1: memref<2x32xf32, #tpu.memory_space<vmem>>, %arg2: memref<128x32xbf16, #tpu.memory_space<vmem>>, %arg3: memref<1x128xf32, #tpu.memory_space<vmem>>, %arg4: memref<2x128xf32, #tpu.memory_space<vmem>>) attributes {dimension_semantics = [#tpu.dimension_semantics<parallel>], iteration_bounds = array<i64: 1>, scalar_prefetch = 0 : i64, scratch_operands = 0 : i64, tpu.core_type = #tpu.core_type<tc>, window_params = [{pipeline_mode = #tpu.pipeline_mode<synchronous>, transform_indices = @transform_0, window_bounds = array<i64: 2, 32>}, {transform_indices = @transform_1, window_bounds = array<i64: 128, 32>}, {transform_indices = @transform_2, window_bounds = array<i64: 1, 128>}, {transform_indices = @transform_3, window_bounds = array<i64: 2, 128>}]} {
    %c0 = arith.constant 0 : index
    %c0_0 = arith.constant 0 : index
    %0 = vector.load %arg1[%c0, %c0_0] : memref<2x32xf32, #tpu.memory_space<vmem>>, vector<2x32xf32>
    %1 = arith.truncf %0 : vector<2x32xf32> to vector<2x32xbf16>
    %c0_1 = arith.constant 0 : index
    %c0_2 = arith.constant 0 : index
    %2 = vector.load %arg2[%c0_1, %c0_2] : memref<128x32xbf16, #tpu.memory_space<vmem>>, vector<128x32xbf16>
    %cst = arith.constant dense<0.000000e+00> : vector<2x128xf32>
    %3 = tpu.matmul %1, %2, %cst {dimension_numbers = #tpu.dot_dimension_numbers<[1], [1], [0], [0], [0, 0, 1, 0], [], []>} : vector<2x32xbf16>, vector<128x32xbf16>, vector<2x128xf32> -> vector<2x128xf32>
    %c0_3 = arith.constant 0 : index
    %c0_4 = arith.constant 0 : index
    %4 = vector.load %arg3[%c0_3, %c0_4] : memref<1x128xf32, #tpu.memory_space<vmem>>, vector<1x128xf32>
    %5 = vector.broadcast %4 : vector<1x128xf32> to vector<2x128xf32>
    %6 = arith.addf %3, %5 : vector<2x128xf32>
    %7 = math.tanh %6 : vector<2x128xf32>
    %c0_5 = arith.constant 0 : index
    %c0_6 = arith.constant 0 : index
    %8 = vector.load %arg4[%c0_5, %c0_6] : memref<2x128xf32, #tpu.memory_space<vmem>>, vector<2x128xf32>
    tpu.vector_store %arg4[%c0_5, %c0_6], %7 {strides = array<i32>} : memref<2x128xf32, #tpu.memory_space<vmem>>, vector<2x128xf32>,
    return
  }
  func.func @transform_0(%arg0: i32) -> (i32, i32) {
    %c0_i32 = arith.constant 0 : i32
    %c0_i32_0 = arith.constant 0 : i32
    %c0_i32_1 = arith.constant 0 : i32
    return %c0_i32, %c0_i32_0 : i32, i32
  }
  func.func @transform_1(%arg0: i32) -> (i32, i32) {
    %c0_i32 = arith.constant 0 : i32
    %c0_i32_0 = arith.constant 0 : i32
    return %arg0, %c0_i32 : i32, i32
  }
  func.func @transform_2(%arg0: i32) -> (i32, i32) {
    %c0_i32 = arith.constant 0 : i32
    %c0_i32_0 = arith.constant 0 : i32
    return %c0_i32, %arg0 : i32, i32
  }
  func.func @transform_3(%arg0: i32) -> (i32, i32) {
    %c0_i32 = arith.constant 0 : i32
    %c0_i32_0 = arith.constant 0 : i32
    return %c0_i32, %arg0 : i32, i32
  }
}

</mosaic_0001>

<llo_original>
// kernel: tpu_custom_call.1
$region0: #{tpu_custom_call.1}
  #allocation0 [shape = 'u32[]', space=smem, size = 0x4, offset = 0x4, fixed_abs, tag = 'smem constant byte address 0x4 - core index']
  #allocation1 [shape = 'u32[72,128]{1,0:T(1,128)}', space=vmem, size = 0x9000, scoped, tag = 'internal scratch']
  %s0 = inlined_call_operand.vmem [shape: f32[2,32], index: 0, kind: input, shape index: {}]
  %s1 = inlined_call_operand.vmem [shape: bf16[128,32], index: 1, kind: input, shape index: {}]
  %s2 = inlined_call_operand.vmem [shape: f32[1,128], index: 2, kind: input, shape index: {}]
  %s3 = inlined_call_operand.hbm [shape: f32[2,128], index: 3, kind: output, shape index: {}]
  %s4 = sld [smem:[#allocation0]]
  $region22: #{tpu_custom_call.1} parent=0
    _
  %s6 = ssub.s32 1, %s4
  %s7 = scalar_select 0, %s6, %s4
  $region1: #{tpu_custom_call.1} parent=0
    #allocation2 [shape = 'u8[1024]{0}', space=vmem, size = 0x400, scoped, tag = 'output window, operand 0, single buffered']
    #allocation3 [shape = 's32[1]{0}', space=sflag, size = 0x4, scoped, tag = 'scoped memory for tpu_custom_call.1']
    %8 = vsyncpa [#allocation3], 0
    // Predicated region
    $region2: #{tpu_custom_call.1} parent=1 // pred_check
      _
    $region3: #{tpu_custom_call.1} parent=1 // pred_check_branch
      %10 = sbr.rel (0) target = $region5
    $region4: #{tpu_custom_call.1} parent=1 // pred_region
      _
    $region5: #{tpu_custom_call.1} parent=1 // pred_fallthru
      _
    // Predicated region
    $region6: #{tpu_custom_call.1} parent=1 // pred_check
      _
    $region7: #{tpu_custom_call.1} parent=1 // pred_check_branch
      %12 = sbr.rel (0) target = $region9
    $region8: #{tpu_custom_call.1} parent=1 // pred_region
      _
    $region9: #{tpu_custom_call.1} parent=1 // pred_fallthru
      _
    // Predicated region
    $region10: #{tpu_custom_call.1} parent=1 // pred_check
      _
    $region11: #{tpu_custom_call.1} parent=1 // pred_check_branch
      %14 = sbr.rel (0) target = $region13
    $region12: #{tpu_custom_call.1} parent=1 // pred_region
      _
    $region13: #{tpu_custom_call.1} parent=1 // pred_fallthru
      _
    %v15 = vld [vmem:[%s0] sm:$0x3]
    %v16 = vpack.c.bf16 %v15, %v15
    %v17 = vld [vmem:[%s1] sm:$0xf]
    %v18 = vld [vmem:[%s1 + $0x4] sm:$0xf]
    %v19 = vld [vmem:[%s1 + $0x8] sm:$0xf]
    %v20 = vld [vmem:[%s1 + $0xc] sm:$0xf]
    %v21 = vld [vmem:[%s1 + $0x10] sm:$0xf]
    %v22 = vld [vmem:[%s1 + $0x14] sm:$0xf]
    %v23 = vld [vmem:[%s1 + $0x18] sm:$0xf]
    %v24 = vld [vmem:[%s1 + $0x1c] sm:$0xf]
    %v25 = vld [vmem:[%s1 + $0x20] sm:$0xf]
    %v26 = vld [vmem:[%s1 + $0x24] sm:$0xf]
    %v27 = vld [vmem:[%s1 + $0x28] sm:$0xf]
    %v28 = vld [vmem:[%s1 + $0x2c] sm:$0xf]
    %v29 = vld [vmem:[%s1 + $0x30] sm:$0xf]
    %v30 = vld [vmem:[%s1 + $0x34] sm:$0xf]
    %v31 = vld [vmem:[%s1 + $0x38] sm:$0xf]
    %v32 = vld [vmem:[%s1 + $0x3c] sm:$0xf]
    %v33 = vld [vmem:[%s2] sm:$0x1]
    %v35 = vperm.slane %v33, 0
    %v53 = vunpack.c.l.b16 %v17
    %v54 = vunpack.c.l.b16 %v18
    %v55 = vunpack.c.l.b16 %v19
    %v56 = vunpack.c.l.b16 %v20
    %v57 = vunpack.c.l.b16 %v21
    %v58 = vunpack.c.l.b16 %v22
    %v59 = vunpack.c.l.b16 %v23
    %v60 = vunpack.c.l.b16 %v24
    %v61 = vunpack.c.l.b16 %v25
    %v62 = vunpack.c.l.b16 %v26
    %v63 = vunpack.c.l.b16 %v27
    %v64 = vunpack.c.l.b16 %v28
    %v65 = vunpack.c.l.b16 %v29
    %v66 = vunpack.c.l.b16 %v30
    %v67 = vunpack.c.l.b16 %v31
    %v68 = vunpack.c.l.b16 %v32
    %v69 = vpack.c.b16 %v54, %v53
    %v70 = vpack.c.b16 %v56, %v55
    %v71 = vpack.c.b16 %v58, %v57
    %v72 = vpack.c.b16 %v60, %v59
    %v73 = vpack.c.b16 %v62, %v61
    %v74 = vpack.c.b16 %v64, %v63
    %v75 = vpack.c.b16 %v66, %v65
    %v76 = vpack.c.b16 %v68, %v67
    %vm77 = vcmask 261120
    %v79 = vsel %vm77, %v16, 0
    %v82 = vsel %vm77, %v69, 0
    %v85 = vsel %vm77, %v70, 0
    %v88 = vsel %vm77, %v71, 0
    %v91 = vsel %vm77, %v72, 0
    %v94 = vsel %vm77, %v73, 0
    %v97 = vsel %vm77, %v74, 0
    %v100 = vsel %vm77, %v75, 0
    %v103 = vsel %vm77, %v76, 0
    %105 = vmatpush.bf16.xpose.msra.mxu0 %v103
    %106 = vmatpush.bf16.xpose.msra.mxu0 %v100
    %107 = vmatpush.bf16.xpose.msra.mxu0 %v97
    %108 = vmatpush.bf16.xpose.msra.mxu0 %v94
    %109 = vmatpush.bf16.xpose.msra.mxu0 %v91
    %110 = vmatpush.bf16.xpose.msra.mxu0 %v88
    %111 = vmatpush.bf16.xpose.msra.mxu0 %v85
    %112 = vmatpush.bf16.xpose.msra.mxu0 %v82
    %113 = vmatmul.bf16.gmra.mxu0 %v79
    %v114 = vpop.f32.mrf.mxu0
    %v115 = vadd.f32 %v35, %v114
    %v116 = vpop.f32.mrf.mxu0
    %117 = vdwg.mxu0
    %v118 = vtanh.pop %v115
    %119 = vst [vmem:[#allocation2] sm:$0x3] %v118
    // Predicated region
    $region14: #{tpu_custom_call.1} parent=1 // pred_check
      _
    $region15: #{tpu_custom_call.1} parent=1 // pred_check_branch
      %121 = sbr.rel (0) target = $region17
    $region16: #{tpu_custom_call.1} parent=1 // pred_region
      %123 = vsyncadd [#allocation3], 0
      %s125 = sshll.u32 [#allocation2], 4
      %s126 = int_to_ptr.vmem [resolvable:$true] %s125
      %s127 = sshll.u32 %s3, 4
      %s128 = int_to_ptr.hbm [resolvable:$true] %s127
      %130 = dma.vmem_to_hbm [thread:$0]  %s126, 32, %s128, [#allocation3]
    $region17: #{tpu_custom_call.1} parent=1 // pred_fallthru
      _
    // Predicated region
    $region18: #{tpu_custom_call.1} parent=1 // pred_check
      _
    $region19: #{tpu_custom_call.1} parent=1 // pred_check_branch
      %132 = sbr.rel (0) target = $region21
    $region20: #{tpu_custom_call.1} parent=1 // pred_region
      %134 = dma.done [#allocation3], 32
    $region21: #{tpu_custom_call.1} parent=1 // pred_fallthru
      _
    %135 = vsyncpa [#allocation3], 1

</llo_original>
